<compile_context>
chip_gen: v5e
topology: v5e:2x2
jax: 0.10.0
libtpu: 0.0.40
codegen_flags: <defaults>
</compile_context>

<pallas_src>
import jax
import jax.numpy as jnp
from jax.experimental import pallas as pl
from jax.experimental.pallas import tpu as pltpu

EPS = 1e-5  # nn.InstanceNorm1d default


def suppress_kernel(x_ref, wp_ref, b2_ref, o_ref):
    # x_ref : (B, S, C)  activations, native layout, C on the lane axis
    # wp_ref: (E, S + 2) packed [ w1 | b1 | w2 ]
    # b2_ref: (1, 1)     mlp2 bias (SMEM scalar)
    # o_ref : (B, C)     sigmoid output
    B, S, _ = x_ref.shape
    wp = wp_ref[...]
    w1 = wp[:, :S]             # (E, S)
    b1 = wp[:, S:S + 1]        # (E, 1), broadcasts over lanes
    w2 = wp[:, S + 1:S + 2]    # (E, 1), broadcasts over lanes
    b2 = b2_ref[0, 0]
    inv_s = 1.0 / S

    for b in range(B):  # static unroll; B is tiny (2)
        xb = x_ref[b]                                            # (S, C)

        # InstanceNorm1d over the segment dim S (one-pass stats, biased var)
        mean = jnp.sum(xb, axis=0, keepdims=True) * inv_s        # (1, C)
        ex2 = jnp.sum(xb * xb, axis=0, keepdims=True) * inv_s    # (1, C)
        var = jnp.maximum(ex2 - mean * mean, 0.0)
        xn = (xb - mean) * jax.lax.rsqrt(var + EPS)              # (S, C)

        # mlp1 + ReLU: (E, S) @ (S, C) on the MXU, f32 accumulate
        h = jnp.dot(w1, xn, preferred_element_type=jnp.float32) + b1
        h = jnp.maximum(h, 0.0)                                  # (E, C)

        # mlp2 (output dim 1 -> sublane reduce over E) + sigmoid
        z = jnp.sum(h * w2, axis=0, keepdims=True) + b2          # (1, C)
        o_ref[b:b + 1, :] = jax.nn.sigmoid(z)


def pack_params(w1, b1, w2, b2):
    """One-time packing of the MLP params: one VMEM operand + one SMEM scalar."""
    E, _ = w1.shape
    wpack = jnp.concatenate(
        [jnp.asarray(w1, jnp.float32),
         jnp.asarray(b1, jnp.float32).reshape(E, 1),
         jnp.asarray(w2, jnp.float32).reshape(E, 1)],
        axis=1)                                              # (E, S + 2)
    b2_s = jnp.asarray(b2, jnp.float32).reshape(1, 1)        # (1, 1) SMEM scalar
    return wpack, b2_s


def suppress_net_forward(x, wpack, b2_s):
    """x: [B, S, C] float32, wpack: [E, S+2], b2_s: [1, 1]. Returns [B, C]."""
    B, S, C = x.shape
    return pl.pallas_call(
        suppress_kernel,
        out_shape=jax.ShapeDtypeStruct((B, C), jnp.float32),
        in_specs=[
            pl.BlockSpec(memory_space=pltpu.MemorySpace.VMEM),  # x     (B, S, C)
            pl.BlockSpec(memory_space=pltpu.MemorySpace.VMEM),  # wpack (E, S+2)
            pl.BlockSpec(memory_space=pltpu.MemorySpace.SMEM),  # b2    (1, 1)
        ],
        out_specs=pl.BlockSpec(memory_space=pltpu.MemorySpace.VMEM),
    )(jnp.asarray(x, jnp.float32), wpack, b2_s)


def suppress_net_ref(x, w1, b1, w2, b2):
    """Pure-JAX reference mirroring the PyTorch forward."""
    xb = jnp.transpose(x, (0, 2, 1))  # [B, C, S]
    mean = jnp.mean(xb, axis=-1, keepdims=True)
    var = jnp.mean(jnp.square(xb - mean), axis=-1, keepdims=True)
    xn = (xb - mean) / jnp.sqrt(var + EPS)
    h = jnp.maximum(xn @ w1.T + b1, 0.0)
    z = jax.nn.sigmoid(h @ w2.T + b2)
    return z[..., 0]


def init_params(key, n_seglen):
    """Deterministic init matching nn.Linear shapes (uniform +-1/sqrt(fan_in))."""
    E = 2 * n_seglen
    k1, k2, k3, k4 = jax.random.split(key, 4)
    bd1 = 1.0 / jnp.sqrt(n_seglen)
    bd2 = 1.0 / jnp.sqrt(E)
    w1 = jax.random.uniform(k1, (E, n_seglen), jnp.float32, -bd1, bd1)
    b1 = jax.random.uniform(k2, (E,), jnp.float32, -bd1, bd1)
    w2 = jax.random.uniform(k3, (1, E), jnp.float32, -bd2, bd2)
    b2 = jax.random.uniform(k4, (1,), jnp.float32, -bd2, bd2)
    return w1, b1, w2, b2


if __name__ == "__main__":
    # opt = {'num_of_class': 21, 'segment_size': 8}  ->  C = 20, S = 8, E = 16
    B, S, C = 2, 8, 20

    key = jax.random.PRNGKey(0)
    kx, kp = jax.random.split(key)
    x = jax.random.normal(kx, (B, S, C), jnp.float32)
    w1, b1, w2, b2 = init_params(kp, S)

    # Pack weights once (outside the hot path), then call the kernel.
    wpack, b2_s = pack_params(w1, b1, w2, b2)
    out = jax.block_until_ready(suppress_net_forward(x, wpack, b2_s))
    ref = jax.block_until_ready(suppress_net_ref(x, w1, b1, w2, b2))

    assert out.shape == (B, C), out.shape
    assert jnp.allclose(out, ref, atol=1e-5, rtol=1e-5), (
        f"max abs err = {jnp.max(jnp.abs(out - ref))}")
    print("KERNEL_OK")
</pallas_src>

<mosaic_0001>
module attributes {stable_mosaic.version = 11 : i64} {
  func.func @suppress_kernel(%arg0: memref<2x8x20xf32, #tpu.memory_space<vmem>>, %arg1: memref<16x10xf32, #tpu.memory_space<vmem>>, %arg2: memref<1x1xf32, #tpu.memory_space<smem>>, %arg3: memref<2x20xf32, #tpu.memory_space<vmem>>) attributes {dimension_semantics = [], scalar_prefetch = 0 : i64, scratch_operands = 0 : i64, tpu.core_type = #tpu.core_type<tc>} {
    %c0 = arith.constant 0 : index
    %c0_0 = arith.constant 0 : index
    %0 = vector.load %arg1[%c0, %c0_0] : memref<16x10xf32, #tpu.memory_space<vmem>>, vector<16x10xf32>
    %1 = vector.extract_strided_slice %0 {offsets = [0, 0], sizes = [16, 8], strides = [1, 1]} : vector<16x10xf32> to vector<16x8xf32>
    %2 = vector.extract_strided_slice %0 {offsets = [0, 8], sizes = [16, 1], strides = [1, 1]} : vector<16x10xf32> to vector<16x1xf32>
    %3 = vector.extract_strided_slice %0 {offsets = [0, 9], sizes = [16, 1], strides = [1, 1]} : vector<16x10xf32> to vector<16x1xf32>
    %c0_1 = arith.constant 0 : index
    %c0_2 = arith.constant 0 : index
    %4 = memref.load %arg2[%c0_1, %c0_2] : memref<1x1xf32, #tpu.memory_space<smem>>
    %c0_3 = arith.constant 0 : index
    %c0_4 = arith.constant 0 : index
    %c0_5 = arith.constant 0 : index
    %5 = vector.load %arg0[%c0_3, %c0_4, %c0_5] : memref<2x8x20xf32, #tpu.memory_space<vmem>>, vector<1x8x20xf32>
    %6 = vector.shape_cast %5 : vector<1x8x20xf32> to vector<8x20xf32>
    %cst = arith.constant dense<0.000000e+00> : vector<20xf32>
    %7 = vector.multi_reduction <add>, %6, %cst [0] : vector<8x20xf32> to vector<20xf32>
    %8 = vector.shape_cast %7 : vector<20xf32> to vector<1x20xf32>
    %cst_6 = arith.constant 1.250000e-01 : f32
    %9 = vector.broadcast %cst_6 : f32 to vector<1x20xf32>
    %10 = arith.mulf %8, %9 : vector<1x20xf32>
    %11 = arith.mulf %6, %6 : vector<8x20xf32>
    %cst_7 = arith.constant dense<0.000000e+00> : vector<20xf32>
    %12 = vector.multi_reduction <add>, %11, %cst_7 [0] : vector<8x20xf32> to vector<20xf32>
    %13 = vector.shape_cast %12 : vector<20xf32> to vector<1x20xf32>
    %cst_8 = arith.constant 1.250000e-01 : f32
    %14 = vector.broadcast %cst_8 : f32 to vector<1x20xf32>
    %15 = arith.mulf %13, %14 : vector<1x20xf32>
    %16 = arith.mulf %10, %10 : vector<1x20xf32>
    %17 = arith.subf %15, %16 : vector<1x20xf32>
    %cst_9 = arith.constant 0.000000e+00 : f32
    %18 = vector.broadcast %cst_9 : f32 to vector<1x20xf32>
    %19 = arith.maximumf %17, %18 : vector<1x20xf32>
    %20 = vector.broadcast %10 : vector<1x20xf32> to vector<8x20xf32>
    %21 = arith.subf %6, %20 : vector<8x20xf32>
    %cst_10 = arith.constant 9.99999974E-6 : f32
    %22 = vector.broadcast %cst_10 : f32 to vector<1x20xf32>
    %23 = arith.addf %19, %22 : vector<1x20xf32>
    %24 = math.rsqrt %23 : vector<1x20xf32>
    %25 = vector.broadcast %24 : vector<1x20xf32> to vector<8x20xf32>
    %26 = arith.mulf %21, %25 : vector<8x20xf32>
    %cst_11 = arith.constant dense<0.000000e+00> : vector<16x20xf32>
    %27 = tpu.matmul %1, %26, %cst_11 {dimension_numbers = #tpu.dot_dimension_numbers<[1], [0], [0], [1], [0, 0, 1, 1], [], []>} : vector<16x8xf32>, vector<8x20xf32>, vector<16x20xf32> -> vector<16x20xf32>
    %28 = vector.broadcast %2 : vector<16x1xf32> to vector<16x20xf32>
    %29 = arith.addf %27, %28 : vector<16x20xf32>
    %cst_12 = arith.constant 0.000000e+00 : f32
    %30 = vector.broadcast %cst_12 : f32 to vector<16x20xf32>
    %31 = arith.maximumf %29, %30 : vector<16x20xf32>
    %32 = vector.broadcast %3 : vector<16x1xf32> to vector<16x20xf32>
    %33 = arith.mulf %31, %32 : vector<16x20xf32>
    %cst_13 = arith.constant dense<0.000000e+00> : vector<20xf32>
    %34 = vector.multi_reduction <add>, %33, %cst_13 [0] : vector<16x20xf32> to vector<20xf32>
    %35 = vector.shape_cast %34 : vector<20xf32> to vector<1x20xf32>
    %36 = vector.broadcast %4 : f32 to vector<1x20xf32>
    %37 = arith.addf %35, %36 : vector<1x20xf32>
    %38 = arith.negf %37 : vector<1x20xf32>
    %39 = math.exp %38 : vector<1x20xf32>
    %cst_14 = arith.constant 1.000000e+00 : f32
    %40 = vector.broadcast %cst_14 : f32 to vector<1x20xf32>
    %41 = arith.addf %40, %39 : vector<1x20xf32>
    %42 = arith.divf %40, %41 : vector<1x20xf32>
    %c0_15 = arith.constant 0 : index
    %c0_16 = arith.constant 0 : index
    %43 = vector.load %arg3[%c0_15, %c0_16] : memref<2x20xf32, #tpu.memory_space<vmem>>, vector<1x20xf32>
    tpu.vector_store %arg3[%c0_15, %c0_16], %42 {strides = array<i32>} : memref<2x20xf32, #tpu.memory_space<vmem>>, vector<1x20xf32>,
    %c1 = arith.constant 1 : index
    %c0_17 = arith.constant 0 : index
    %c0_18 = arith.constant 0 : index
    %44 = vector.load %arg0[%c1, %c0_17, %c0_18] : memref<2x8x20xf32, #tpu.memory_space<vmem>>, vector<1x8x20xf32>
    %45 = vector.shape_cast %44 : vector<1x8x20xf32> to vector<8x20xf32>
    %cst_19 = arith.constant dense<0.000000e+00> : vector<20xf32>
    %46 = vector.multi_reduction <add>, %45, %cst_19 [0] : vector<8x20xf32> to vector<20xf32>
    %47 = vector.shape_cast %46 : vector<20xf32> to vector<1x20xf32>
    %cst_20 = arith.constant 1.250000e-01 : f32
    %48 = vector.broadcast %cst_20 : f32 to vector<1x20xf32>
    %49 = arith.mulf %47, %48 : vector<1x20xf32>
    %50 = arith.mulf %45, %45 : vector<8x20xf32>
    %cst_21 = arith.constant dense<0.000000e+00> : vector<20xf32>
    %51 = vector.multi_reduction <add>, %50, %cst_21 [0] : vector<8x20xf32> to vector<20xf32>
    %52 = vector.shape_cast %51 : vector<20xf32> to vector<1x20xf32>
    %cst_22 = arith.constant 1.250000e-01 : f32
    %53 = vector.broadcast %cst_22 : f32 to vector<1x20xf32>
    %54 = arith.mulf %52, %53 : vector<1x20xf32>
    %55 = arith.mulf %49, %49 : vector<1x20xf32>
    %56 = arith.subf %54, %55 : vector<1x20xf32>
    %cst_23 = arith.constant 0.000000e+00 : f32
    %57 = vector.broadcast %cst_23 : f32 to vector<1x20xf32>
    %58 = arith.maximumf %56, %57 : vector<1x20xf32>
    %59 = vector.broadcast %49 : vector<1x20xf32> to vector<8x20xf32>
    %60 = arith.subf %45, %59 : vector<8x20xf32>
    %cst_24 = arith.constant 9.99999974E-6 : f32
    %61 = vector.broadcast %cst_24 : f32 to vector<1x20xf32>
    %62 = arith.addf %58, %61 : vector<1x20xf32>
    %63 = math.rsqrt %62 : vector<1x20xf32>
    %64 = vector.broadcast %63 : vector<1x20xf32> to vector<8x20xf32>
    %65 = arith.mulf %60, %64 : vector<8x20xf32>
    %cst_25 = arith.constant dense<0.000000e+00> : vector<16x20xf32>
    %66 = tpu.matmul %1, %65, %cst_25 {dimension_numbers = #tpu.dot_dimension_numbers<[1], [0], [0], [1], [0, 0, 1, 1], [], []>} : vector<16x8xf32>, vector<8x20xf32>, vector<16x20xf32> -> vector<16x20xf32>
    %67 = vector.broadcast %2 : vector<16x1xf32> to vector<16x20xf32>
    %68 = arith.addf %66, %67 : vector<16x20xf32>
    %cst_26 = arith.constant 0.000000e+00 : f32
    %69 = vector.broadcast %cst_26 : f32 to vector<16x20xf32>
    %70 = arith.maximumf %68, %69 : vector<16x20xf32>
    %71 = vector.broadcast %3 : vector<16x1xf32> to vector<16x20xf32>
    %72 = arith.mulf %70, %71 : vector<16x20xf32>
    %cst_27 = arith.constant dense<0.000000e+00> : vector<20xf32>
    %73 = vector.multi_reduction <add>, %72, %cst_27 [0] : vector<16x20xf32> to vector<20xf32>
    %74 = vector.shape_cast %73 : vector<20xf32> to vector<1x20xf32>
    %75 = vector.broadcast %4 : f32 to vector<1x20xf32>
    %76 = arith.addf %74, %75 : vector<1x20xf32>
    %77 = arith.negf %76 : vector<1x20xf32>
    %78 = math.exp %77 : vector<1x20xf32>
    %cst_28 = arith.constant 1.000000e+00 : f32
    %79 = vector.broadcast %cst_28 : f32 to vector<1x20xf32>
    %80 = arith.addf %79, %78 : vector<1x20xf32>
    %81 = arith.divf %79, %80 : vector<1x20xf32>
    %c1_29 = arith.constant 1 : index
    %c0_30 = arith.constant 0 : index
    %82 = vector.load %arg3[%c1_29, %c0_30] : memref<2x20xf32, #tpu.memory_space<vmem>>, vector<1x20xf32>
    tpu.vector_store %arg3[%c1_29, %c0_30], %81 {strides = array<i32>} : memref<2x20xf32, #tpu.memory_space<vmem>>, vector<1x20xf32>,
    return
  }
}

</mosaic_0001>

<llo_original>
// kernel: tpu_custom_call.1
$region0: #{tpu_custom_call.1}
  #allocation0 [shape = 'u32[]', space=smem, size = 0x4, offset = 0x4, fixed_abs, tag = 'smem constant byte address 0x4 - core index']
  #allocation1 [shape = 'u32[72,128]{1,0:T(1,128)}', space=vmem, size = 0x9000, scoped, tag = 'internal scratch']
  #allocation2 [shape = 'f32[1,1]{1,0:T(1,128)S(6)}', space=smem, size = 0x200, scoped, tag = 'scoped memory for tpu_custom_call.1']
  %s0 = inlined_call_operand.hbm [shape: f32[2,8,20], index: 0, kind: input, shape index: {}]
  %s1 = inlined_call_operand.hbm [shape: f32[16,10], index: 1, kind: input, shape index: {}]
  %s2 = inlined_call_operand.<no memory space> [shape: f32[1,1], index: 2, kind: input, shape index: {}]
  %s3 = inlined_call_operand.hbm [shape: f32[2,20], index: 3, kind: output, shape index: {}]
  %s4 = sld [smem:[#allocation0]]
  $region30: #{tpu_custom_call.1} parent=0
    _
  %s6 = ssub.s32 1, %s4
  %s7 = scalar_select 0, %s6, %s4
  %8 = sst [smem:[#allocation2]] %s2
  $region1: #{tpu_custom_call.1} parent=0
    #allocation3 [shape = 'u8[8192]{0}', space=vmem, size = 0x2000, scoped, tag = 'input window, operand 0, single buffered']
    #allocation4 [shape = 's32[1]{0}', space=sflag, size = 0x4, scoped, tag = 'scoped memory for tpu_custom_call.1']
    #allocation5 [shape = 's32[1]{0}', space=sflag, size = 0x4, scoped, tag = 'scoped memory for tpu_custom_call.1']
    #allocation6 [shape = 'u8[8192]{0}', space=vmem, size = 0x2000, scoped, tag = 'input window, operand 1, single buffered']
    #allocation7 [shape = 's32[1]{0}', space=sflag, size = 0x4, scoped, tag = 'scoped memory for tpu_custom_call.1']
    #allocation8 [shape = 'u8[1024]{0}', space=vmem, size = 0x400, scoped, tag = 'output window, operand 0, single buffered']
    %9 = vsyncpa [#allocation4], 0
    %10 = vsyncpa [#allocation7], 0
    %11 = vsyncpa [#allocation5], 0
    // Predicated region
    $region2: #{tpu_custom_call.1} parent=1 // pred_check
      _
    $region3: #{tpu_custom_call.1} parent=1 // pred_check_branch
      %13 = sbr.rel (0) target = $region5
    $region4: #{tpu_custom_call.1} parent=1 // pred_region
      %15 = vsyncadd [#allocation4], 0
      %s16 = sshll.u32 %s0, 4
      %s17 = int_to_ptr.hbm [resolvable:$true] %s16
      %s18 = sshll.u32 [#allocation3], 4
      %s19 = int_to_ptr.vmem [resolvable:$true] %s18
      %24 = dma.hbm_to_vmem [thread:$0]  %s17, 256, %s19, [#allocation4], 128, 128, 8
    $region5: #{tpu_custom_call.1} parent=1 // pred_fallthru
      _
    // Predicated region
    $region6: #{tpu_custom_call.1} parent=1 // pred_check
      _
    $region7: #{tpu_custom_call.1} parent=1 // pred_check_branch
      %26 = sbr.rel (0) target = $region9
    $region8: #{tpu_custom_call.1} parent=1 // pred_region
      %28 = vsyncadd [#allocation7], 0
      %s29 = sshll.u32 %s1, 4
      %s30 = int_to_ptr.hbm [resolvable:$true] %s29
      %s31 = sshll.u32 [#allocation6], 4
      %s32 = int_to_ptr.vmem [resolvable:$true] %s31
      %37 = dma.hbm_to_vmem [thread:$0]  %s30, 256, %s32, [#allocation7], 128, 128, 8
    $region9: #{tpu_custom_call.1} parent=1 // pred_fallthru
      _
    // Predicated region
    $region10: #{tpu_custom_call.1} parent=1 // pred_check
      _
    $region11: #{tpu_custom_call.1} parent=1 // pred_check_branch
      %39 = sbr.rel (0) target = $region13
    $region12: #{tpu_custom_call.1} parent=1 // pred_region
      _
    $region13: #{tpu_custom_call.1} parent=1 // pred_fallthru
      _
    // Predicated region
    $region14: #{tpu_custom_call.1} parent=1 // pred_check
      _
    $region15: #{tpu_custom_call.1} parent=1 // pred_check_branch
      %41 = sbr.rel (0) target = $region17
    $region16: #{tpu_custom_call.1} parent=1 // pred_region
      %43 = dma.done [#allocation4], 256
    $region17: #{tpu_custom_call.1} parent=1 // pred_fallthru
      _
    // Predicated region
    $region18: #{tpu_custom_call.1} parent=1 // pred_check
      _
    $region19: #{tpu_custom_call.1} parent=1 // pred_check_branch
      %45 = sbr.rel (0) target = $region21
    $region20: #{tpu_custom_call.1} parent=1 // pred_region
      %47 = dma.done [#allocation7], 256
    $region21: #{tpu_custom_call.1} parent=1 // pred_fallthru
      _
    %v48 = vld [vmem:[#allocation6] sm:$0xff]
    %v49 = vld [vmem:[#allocation6 + $0x8] sm:$0xff]
    %s50 = sld [smem:[#allocation2]]
    %v51 = vld [vmem:[#allocation3] sm:$0xff]
    %vm52 = vcmask 162816
    %v53 = vsel %vm52, %v51, 0.0
    %v54 = vrot.slane %v53, 4
    %v55 = vadd.f32 %v53, %v54
    %v56 = vrot.slane %v55, 2
    %v57 = vadd.f32 %v55, %v56
    %v58 = vrot.slane %v57, 1
    %v59 = vadd.f32 %v57, %v58
    %v60 = vmul.f32 %v59, 0.125
    %v61 = vmul.f32 %v51, %v51
    %v62 = vsel %vm52, %v61, 0.0
    %v63 = vrot.slane %v62, 4
    %v64 = vadd.f32 %v62, %v63
    %v65 = vrot.slane %v64, 2
    %v66 = vadd.f32 %v64, %v65
    %v67 = vrot.slane %v66, 1
    %v68 = vadd.f32 %v66, %v67
    %v69 = vmul.f32 %v68, 0.125
    %v70 = vmul.f32 %v60, %v60
    %v71 = vsub.f32 %v69, %v70
    %v72 = vmax.f32 %v71, 0.0
    %v73 = vsub.f32 %v51, %v60
    %v74 = vadd.f32 %v72, 1e-05
    %v75 = vrsqrt.pop %v74
    %v76 = vmul.f32 %v75, %v74
    %v77 = vmul.f32 %v76, %v75
    %v78 = vmul.f32 0.5, %v77
    %v79 = vsub.f32 1.5, %v78
    %v80 = vmul.f32 %v75, %v79
    %vm81 = vweird.f32 %v74
    %vm82 = vweird.f32 %v75
    %vm83 = vmor %vm81, %vm82
    %v84 = vsel %vm83, %v75, %v80
    %v85 = vmul.f32 %v73, %v84
    %87 = vset.pattern.permute.xlu0 8
    %88 = vperm.xlu0 %87, %v48
    %v89 = vpop.permute.xlu0 %88
    %92 = vset.pattern.permute.xlu0 8
    %93 = vperm.xlu0 %92, %v49
    %v94 = vpop.permute.xlu0 %93
    %vm96 = vcmask 64512
    %v97 = vsel %vm96, %v48, 0
    %v99 = vsel %vm96, %v49, 0
    %101 = vmatpush.msra.mxu0 0.0
    %102 = vmatpush.msra.mxu0 0.0
    %103 = vmatpush.msra.mxu0 0.0
    %104 = vmatpush.msra.mxu0 0.0
    %105 = vmatpush.msra.mxu0 0.0
    %106 = vmatpush.msra.mxu0 0.0
    %107 = vmatpush.msra.mxu0 0.0
    %108 = vmatpush.msra.mxu0 0.0
    %109 = vmatpush.msra.mxu0 0.0
    %110 = vmatpush.msra.mxu0 0.0
    %111 = vmatpush.msra.mxu0 0.0
    %112 = vmatpush.msra.mxu0 0.0
    %113 = vmatpush.msra.mxu0 0.0
    %114 = vmatpush.msra.mxu0 0.0
    %115 = vmatpush.msra.mxu0 0.0
    %116 = vmatpush.msra.mxu0 %v85
    %117 = vmatmul.f32.gmra.mxu0 %v97
    %v118 = vpop.f32.mrf.mxu0
    %v119 = vadd.f32 %v89, %v118
    %120 = vmatmul.f32.gmra.mxu0 %v99
    %v121 = vpop.f32.mrf.mxu0
    %v122 = vadd.f32 %v94, %v121
    %123 = vdwg.mxu0
    %v124 = vmax.f32 %v119, 0.0
    %v125 = vmax.f32 %v122, 0.0
    %126 = vset.pattern.permute.xlu0 9
    %127 = vperm.xlu0 %126, %v48
    %v128 = vpop.permute.xlu0 %127
    %130 = vset.pattern.permute.xlu0 9
    %131 = vperm.xlu0 %130, %v49
    %v132 = vpop.permute.xlu0 %131
    %v134 = vmul.f32 %v124, %v128
    %v135 = vmul.f32 %v125, %v132
    %v136 = vsel %vm52, %v134, 0.0
    %v137 = vsel %vm52, %v135, 0.0
    %v138 = vadd.f32 %v136, %v137
    %v139 = vrot.slane %v138, 4
    %v140 = vadd.f32 %v138, %v139
    %v141 = vrot.slane %v140, 2
    %v142 = vadd.f32 %v140, %v141
    %v143 = vrot.slane %v142, 1
    %v144 = vadd.f32 %v142, %v143
    %v145 = vstv %s50
    %v146 = vadd.f32 %v144, %v145
    %v147 = vxor.u32 %v146, 2147483648
    %v148 = vmul.f32 %v147, 1.442695
    %v149 = vpow.pop %v148
    %v150 = vadd.f32 %v149, 1.0
    %v151 = vrcp.pop %v150
    %v152 = vmul.f32 %v150, %v151
    %v153 = vsub.f32 1.0, %v152
    %v154 = vmul.f32 %v151, %v153
    %v155 = vadd.f32 %v151, %v154
    %vm156 = vweird.f32 %v150
    %vm157 = vweird.f32 %v151
    %vm158 = vmor %vm156, %vm157
    %v159 = vsel %vm158, %v151, %v155
    %v160 = vand.u32 2147483647, %v150
    %vm161 = vcmp.eq.f32.partialorder %v160, 8.507059e+37
    %v162 = vand.u32 %v150, 2147483648
    %v163 = vor.u32 1.1754944e-38, %v162
    %v164 = vsel %vm161, %v163, %v159
    %v165 = vmul.f32 1.0, %v164
    %vm166 = vcmask 155648
    %167 = vst.msk [vmem:[#allocation8] sm:$0x1] %vm166, %v165
    %s168 = scalar_lea.vmem [#allocation3], 8
    %v169 = vld [vmem:[%s168] sm:$0xff]
    %v170 = vsel %vm52, %v169, 0.0
    %v171 = vrot.slane %v170, 4
    %v172 = vadd.f32 %v170, %v171
    %v173 = vrot.slane %v172, 2
    %v174 = vadd.f32 %v172, %v173
    %v175 = vrot.slane %v174, 1
    %v176 = vadd.f32 %v174, %v175
    %v177 = vmul.f32 %v176, 0.125
    %v178 = vmul.f32 %v169, %v169
    %v179 = vsel %vm52, %v178, 0.0
    %v180 = vrot.slane %v179, 4
    %v181 = vadd.f32 %v179, %v180
    %v182 = vrot.slane %v181, 2
    %v183 = vadd.f32 %v181, %v182
    %v184 = vrot.slane %v183, 1
    %v185 = vadd.f32 %v183, %v184
    %v186 = vmul.f32 %v185, 0.125
    %v187 = vmul.f32 %v177, %v177
    %v188 = vsub.f32 %v186, %v187
    %v189 = vmax.f32 %v188, 0.0
    %v190 = vsub.f32 %v169, %v177
    %v191 = vadd.f32 %v189, 1e-05
    %v192 = vrsqrt.pop %v191
    %v193 = vmul.f32 %v192, %v191
    %v194 = vmul.f32 %v193, %v192
    %v195 = vmul.f32 0.5, %v194
    %v196 = vsub.f32 1.5, %v195
    %v197 = vmul.f32 %v192, %v196
    %vm198 = vweird.f32 %v191
    %vm199 = vweird.f32 %v192
    %vm200 = vmor %vm198, %vm199
    %v201 = vsel %vm200, %v192, %v197
    %v202 = vmul.f32 %v190, %v201
    %203 = vmatpush.msra.mxu0 0.0
    %204 = vmatpush.msra.mxu0 0.0
    %205 = vmatpush.msra.mxu0 0.0
    %206 = vmatpush.msra.mxu0 0.0
    %207 = vmatpush.msra.mxu0 0.0
    %208 = vmatpush.msra.mxu0 0.0
    %209 = vmatpush.msra.mxu0 0.0
    %210 = vmatpush.msra.mxu0 0.0
    %211 = vmatpush.msra.mxu0 0.0
    %212 = vmatpush.msra.mxu0 0.0
    %213 = vmatpush.msra.mxu0 0.0
    %214 = vmatpush.msra.mxu0 0.0
    %215 = vmatpush.msra.mxu0 0.0
    %216 = vmatpush.msra.mxu0 0.0
    %217 = vmatpush.msra.mxu0 0.0
    %218 = vmatpush.msra.mxu0 %v202
    %219 = vmatmul.f32.gmra.mxu0 %v97
    %v220 = vpop.f32.mrf.mxu0
    %v221 = vadd.f32 %v89, %v220
    %222 = vmatmul.f32.gmra.mxu0 %v99
    %v223 = vpop.f32.mrf.mxu0
    %v224 = vadd.f32 %v94, %v223
    %225 = vdwg.mxu0
    %v226 = vmax.f32 %v221, 0.0
    %v227 = vmax.f32 %v224, 0.0
    %v228 = vmul.f32 %v226, %v128
    %v229 = vmul.f32 %v227, %v132
    %v230 = vsel %vm52, %v228, 0.0
    %v231 = vsel %vm52, %v229, 0.0
    %v232 = vadd.f32 %v230, %v231
    %v233 = vrot.slane %v232, 4
    %v234 = vadd.f32 %v232, %v233
    %v235 = vrot.slane %v234, 2
    %v236 = vadd.f32 %v234, %v235
    %v237 = vrot.slane %v236, 1
    %v238 = vadd.f32 %v236, %v237
    %v239 = vadd.f32 %v238, %v145
    %v240 = vxor.u32 %v239, 2147483648
    %v241 = vmul.f32 %v240, 1.442695
    %v242 = vpow.pop %v241
    %v243 = vadd.f32 %v242, 1.0
    %v244 = vrcp.pop %v243
    %v245 = vmul.f32 %v243, %v244
    %v246 = vsub.f32 1.0, %v245
    %v247 = vmul.f32 %v244, %v246
    %v248 = vadd.f32 %v244, %v247
    %vm249 = vweird.f32 %v243
    %vm250 = vweird.f32 %v244
    %vm251 = vmor %vm249, %vm250
    %v252 = vsel %vm251, %v244, %v248
    %v253 = vand.u32 2147483647, %v243
    %vm254 = vcmp.eq.f32.partialorder %v253, 8.507059e+37
    %v255 = vand.u32 %v243, 2147483648
    %v256 = vor.u32 1.1754944e-38, %v255
    %v257 = vsel %vm254, %v256, %v252
    %v258 = vmul.f32 1.0, %v257
    %259 = vst.msk [vmem:[#allocation8 + $0x1] sm:$0x1] %vm166, %v258
    // Predicated region
    $region22: #{tpu_custom_call.1} parent=1 // pred_check
      _
    $region23: #{tpu_custom_call.1} parent=1 // pred_check_branch
      %261 = sbr.rel (0) target = $region25
    $region24: #{tpu_custom_call.1} parent=1 // pred_region
      %263 = vsyncadd [#allocation5], 0
      %s265 = sshll.u32 [#allocation8], 4
      %s266 = int_to_ptr.vmem [resolvable:$true] %s265
      %s267 = sshll.u32 %s3, 4
      %s268 = int_to_ptr.hbm [resolvable:$true] %s267
      %270 = dma.vmem_to_hbm [thread:$0]  %s266, 32, %s268, [#allocation5]
    $region25: #{tpu_custom_call.1} parent=1 // pred_fallthru
      _
    // Predicated region
    $region26: #{tpu_custom_call.1} parent=1 // pred_check
      _
    $region27: #{tpu_custom_call.1} parent=1 // pred_check_branch
      %272 = sbr.rel (0) target = $region29
    $region28: #{tpu_custom_call.1} parent=1 // pred_region
      %274 = dma.done [#allocation5], 32
    $region29: #{tpu_custom_call.1} parent=1 // pred_fallthru
      _
    %275 = vsyncpa [#allocation4], 1
    %276 = vsyncpa [#allocation7], 1
    %277 = vsyncpa [#allocation5], 1

</llo_original>
